<compile_context>
chip_gen: v5e
topology: v5e:2x2
jax: 0.10.0
libtpu: 0.0.40
codegen_flags: <defaults>
</compile_context>

<pallas_src>
import jax
import jax.numpy as jnp
from jax.experimental import pallas as pl
from jax.experimental.pallas import tpu as pltpu

LOG_SIG_MAX = 2.0
LOG_SIG_MIN = -20.0

LANE = 128  # f32 vreg lane width


def _round_up(x, m):
    return (x + m - 1) // m * m


def _gaussian_policy_kernel(x_ref, w1_ref, b1_ref, w2_ref, b2_ref,
                            wm_ref, bm_ref, ws_ref, bs_ref,
                            mean_ref, log_std_ref):
    # x is already bf16 (cast in the wrapper); MXU accumulates in f32,
    # elementwise (bias add / ReLU / clamp) stays f32.
    x = x_ref[...]                                              # (TB, n_in) bf16

    # linear1 + ReLU   (K = n_in, no lane padding of the activation stream)
    h1 = jnp.dot(x, w1_ref[...], preferred_element_type=jnp.float32) + b1_ref[...]
    h1 = jnp.maximum(h1, 0.0).astype(w2_ref.dtype)

    # linear2 + ReLU
    h2 = jnp.dot(h1, w2_ref[...], preferred_element_type=jnp.float32) + b2_ref[...]
    h2 = jnp.maximum(h2, 0.0).astype(wm_ref.dtype)

    # mean head
    mean = jnp.dot(h2, wm_ref[...], preferred_element_type=jnp.float32) + bm_ref[...]
    mean_ref[...] = mean.astype(mean_ref.dtype)

    # log_std head + clamp
    log_std = jnp.dot(h2, ws_ref[...], preferred_element_type=jnp.float32) + bs_ref[...]
    log_std_ref[...] = jnp.clip(log_std, LOG_SIG_MIN, LOG_SIG_MAX).astype(log_std_ref.dtype)


def gaussian_policy_forward(state, params, num_actions, *, block_b=2048):
    """Runs GaussianPolicy.forward: returns (mean, log_std), each (B, num_actions) f32."""
    B, n_in = state.shape
    hid_p = params["w2"].shape[0]
    A = num_actions

    # Batch tiling: split the 8-rounded batch into balanced tiles of at most block_b
    # rows, with >= 2 tiles for B >= 16 so the "parallel" axis feeds both v7x TCs.
    # Choosing TB as ceil(B8 / nt) keeps batch padding to < 8 rows per tile (no
    # round-up-to-TB blow-up for awkward batch sizes).
    B8 = _round_up(B, 8)
    nt = max(pl.cdiv(B8, block_b), 2 if B8 >= 16 else 1)
    TB = _round_up(pl.cdiv(B8, nt), 8)
    Bp = TB * nt

    # bf16 input stream; fuse the cast into the (small) batch pad when one is needed.
    x = state.astype(jnp.bfloat16)
    if Bp != B:
        x = jnp.pad(x, ((0, Bp - B), (0, 0)))

    batch_map = lambda i: (i, 0)   # tiles over batch
    resident = lambda i: (0, 0)    # weights/biases resident across the whole grid

    weights = (params["w1"], params["b1"], params["w2"], params["b2"],
               params["wm"], params["bm"], params["ws"], params["bs"])

    # Advisory cost estimate: tiny-flop, bandwidth-dominated custom call.
    flops = 2 * Bp * (n_in * hid_p + hid_p * hid_p + 2 * hid_p * A)
    bytes_accessed = (Bp * n_in * 2                      # bf16 input stream
                      + 2 * Bp * A * 4                   # two f32 outputs
                      + sum(int(w.size) * w.dtype.itemsize for w in weights))
    cost = pl.CostEstimate(flops=flops, transcendentals=0,
                           bytes_accessed=bytes_accessed)

    mean, log_std = pl.pallas_call(
        _gaussian_policy_kernel,
        out_shape=(jax.ShapeDtypeStruct((Bp, A), jnp.float32),
                   jax.ShapeDtypeStruct((Bp, A), jnp.float32)),
        grid_spec=pltpu.PrefetchScalarGridSpec(
            num_scalar_prefetch=0,
            grid=(nt,),
            in_specs=[
                pl.BlockSpec((TB, n_in), batch_map),          # state tile (bf16)
                pl.BlockSpec(params["w1"].shape, resident),   # (n_in, hid_p) bf16
                pl.BlockSpec(params["b1"].shape, resident),   # (1, hid_p)    f32
                pl.BlockSpec(params["w2"].shape, resident),   # (hid_p, hid_p) bf16
                pl.BlockSpec(params["b2"].shape, resident),   # (1, hid_p)    f32
                pl.BlockSpec(params["wm"].shape, resident),   # (hid_p, A)    bf16
                pl.BlockSpec(params["bm"].shape, resident),   # (1, A)        f32
                pl.BlockSpec(params["ws"].shape, resident),   # (hid_p, A)    bf16
                pl.BlockSpec(params["bs"].shape, resident),   # (1, A)        f32
            ],
            out_specs=[
                pl.BlockSpec((TB, A), batch_map),             # mean
                pl.BlockSpec((TB, A), batch_map),             # log_std
            ],
        ),
        compiler_params=pltpu.CompilerParams(
            dimension_semantics=("parallel",)),   # 2 TCs on v7x; no-op on v5e/v6e
        cost_estimate=cost,
    )(x, *weights)

    return mean[:B], log_std[:B]


def xavier_uniform(key, fan_in, fan_out, gain=1.0):
    limit = gain * jnp.sqrt(6.0 / (fan_in + fan_out))
    return jax.random.uniform(key, (fan_in, fan_out), jnp.float32, -limit, limit)


def init_gaussian_policy(key, num_inputs, num_actions, hidden_dim,
                         compute_dtype=jnp.bfloat16):
    """Returns (kernel_params, ref_params).

    kernel_params: hidden dims lane-padded to 128, bf16 weights / f32 biases.
                   Input dim and action dim are NOT padded (kept at true width).
    ref_params:    unpadded f32 weights matching the PyTorch module exactly.
    """
    k1, k2, k3, k4 = jax.random.split(key, 4)
    # True (unpadded) weights, stored (in, out) == PyTorch (out, in) transposed.
    w1 = xavier_uniform(k1, num_inputs, hidden_dim)
    w2 = xavier_uniform(k2, hidden_dim, hidden_dim)
    wm = xavier_uniform(k3, hidden_dim, num_actions)
    ws = xavier_uniform(k4, hidden_dim, num_actions)
    b1 = jnp.zeros((1, hidden_dim), jnp.float32)
    b2 = jnp.zeros((1, hidden_dim), jnp.float32)
    bm = jnp.zeros((1, num_actions), jnp.float32)
    bs = jnp.zeros((1, num_actions), jnp.float32)

    ref_params = {"w1": w1, "b1": b1, "w2": w2, "b2": b2,
                  "wm": wm, "bm": bm, "ws": ws, "bs": bs}

    hid_p = _round_up(hidden_dim, LANE)   # keep 128-wide; do NOT widen to 256

    def pad2(a, rows, cols, dtype):
        out = jnp.zeros((rows, cols), jnp.float32).at[:a.shape[0], :a.shape[1]].set(a)
        return out.astype(dtype)

    kernel_params = {
        "w1": pad2(w1, num_inputs, hid_p, compute_dtype),
        "b1": pad2(b1, 1, hid_p, jnp.float32),
        "w2": pad2(w2, hid_p, hid_p, compute_dtype),
        "b2": pad2(b2, 1, hid_p, jnp.float32),
        "wm": pad2(wm, hid_p, num_actions, compute_dtype),
        "bm": bm,
        "ws": pad2(ws, hid_p, num_actions, compute_dtype),
        "bs": bs,
    }
    return kernel_params, ref_params


def reference_forward_f32(state, p):
    """Pure f32 reference matching the PyTorch module."""
    h1 = jnp.maximum(state @ p["w1"] + p["b1"], 0.0)
    h2 = jnp.maximum(h1 @ p["w2"] + p["b2"], 0.0)
    mean = h2 @ p["wm"] + p["bm"]
    log_std = jnp.clip(h2 @ p["ws"] + p["bs"], LOG_SIG_MIN, LOG_SIG_MAX)
    return mean, log_std


def reference_forward_mixed(state, p, compute_dtype=jnp.bfloat16):
    """Reference with the same bf16-in / f32-accumulate precision as the kernel."""
    cd = compute_dtype
    dot = lambda a, b: jnp.dot(a, b.astype(cd), preferred_element_type=jnp.float32)
    x = state.astype(cd)
    h1 = jnp.maximum(dot(x, p["w1"]) + p["b1"], 0.0).astype(cd)
    h2 = jnp.maximum(dot(h1, p["w2"]) + p["b2"], 0.0).astype(cd)
    mean = dot(h2, p["wm"]) + p["bm"]
    log_std = jnp.clip(dot(h2, p["ws"]) + p["bs"], LOG_SIG_MIN, LOG_SIG_MAX)
    return mean, log_std


if __name__ == "__main__":
    # Small shapes consistent with the module: (batch, num_inputs) state.
    # B=12 exercises both the 2-tile grid path and batch-row padding.
    B, NUM_INPUTS, NUM_ACTIONS, HIDDEN = 12, 16, 8, 32

    key = jax.random.PRNGKey(0)
    kp, ks = jax.random.split(key)
    params, ref_params = init_gaussian_policy(kp, NUM_INPUTS, NUM_ACTIONS, HIDDEN)
    state = jax.random.normal(ks, (B, NUM_INPUTS), jnp.float32)

    mean, log_std = gaussian_policy_forward(state, params, NUM_ACTIONS)
    mean, log_std = jax.block_until_ready((mean, log_std))

    assert mean.shape == (B, NUM_ACTIONS) and log_std.shape == (B, NUM_ACTIONS)

    # Tight check against a reference with matching (bf16-in / f32-acc) precision.
    mm, ms = reference_forward_mixed(state, ref_params)
    assert jnp.allclose(mean, mm, atol=1e-2, rtol=1e-2)
    assert jnp.allclose(log_std, ms, atol=1e-2, rtol=1e-2)

    # Looser check against the exact f32 module semantics (bf16 rounding noise only).
    fm, fs = reference_forward_f32(state, ref_params)
    assert jnp.allclose(mean, fm, atol=5e-2, rtol=5e-2)
    assert jnp.allclose(log_std, fs, atol=5e-2, rtol=5e-2)
    assert jnp.all(log_std >= LOG_SIG_MIN) and jnp.all(log_std <= LOG_SIG_MAX)

    # TODO(synk): `sample()` (Normal.rsample / tanh-squash / log_prob) is
    # distribution-sampling glue, not a hot-path kernel; only forward() is in Pallas.
    print("KERNEL_OK")
</pallas_src>

<mosaic_0001>
module attributes {stable_mosaic.version = 11 : i64} {
  func.func @_gaussian_policy_kernel(%arg0: i32, %arg1: memref<8x16xbf16, #tpu.memory_space<vmem>>, %arg2: memref<16x128xbf16, #tpu.memory_space<vmem>>, %arg3: memref<1x128xf32, #tpu.memory_space<vmem>>, %arg4: memref<128x128xbf16, #tpu.memory_space<vmem>>, %arg5: memref<1x128xf32, #tpu.memory_space<vmem>>, %arg6: memref<128x8xbf16, #tpu.memory_space<vmem>>, %arg7: memref<1x8xf32, #tpu.memory_space<vmem>>, %arg8: memref<128x8xbf16, #tpu.memory_space<vmem>>, %arg9: memref<1x8xf32, #tpu.memory_space<vmem>>, %arg10: memref<8x8xf32, #tpu.memory_space<vmem>>, %arg11: memref<8x8xf32, #tpu.memory_space<vmem>>) attributes {dimension_semantics = [#tpu.dimension_semantics<parallel>], iteration_bounds = array<i64: 2>, scalar_prefetch = 0 : i64, scratch_operands = 0 : i64, tpu.core_type = #tpu.core_type<tc>, window_params = [{transform_indices = @transform_0, window_bounds = array<i64: 8, 16>}, {pipeline_mode = #tpu.pipeline_mode<synchronous>, transform_indices = @transform_1, window_bounds = array<i64: 16, 128>}, {pipeline_mode = #tpu.pipeline_mode<synchronous>, transform_indices = @transform_2, window_bounds = array<i64: 1, 128>}, {pipeline_mode = #tpu.pipeline_mode<synchronous>, transform_indices = @transform_3, window_bounds = array<i64: 128, 128>}, {pipeline_mode = #tpu.pipeline_mode<synchronous>, transform_indices = @transform_4, window_bounds = array<i64: 1, 128>}, {pipeline_mode = #tpu.pipeline_mode<synchronous>, transform_indices = @transform_5, window_bounds = array<i64: 128, 8>}, {pipeline_mode = #tpu.pipeline_mode<synchronous>, transform_indices = @transform_6, window_bounds = array<i64: 1, 8>}, {pipeline_mode = #tpu.pipeline_mode<synchronous>, transform_indices = @transform_7, window_bounds = array<i64: 128, 8>}, {pipeline_mode = #tpu.pipeline_mode<synchronous>, transform_indices = @transform_8, window_bounds = array<i64: 1, 8>}, {transform_indices = @transform_9, window_bounds = array<i64: 8, 8>}, {transform_indices = @transform_10, window_bounds = array<i64: 8, 8>}]} {
    %c0 = arith.constant 0 : index
    %c0_0 = arith.constant 0 : index
    %0 = vector.load %arg1[%c0, %c0_0] : memref<8x16xbf16, #tpu.memory_space<vmem>>, vector<8x16xbf16>
    %c0_1 = arith.constant 0 : index
    %c0_2 = arith.constant 0 : index
    %1 = vector.load %arg2[%c0_1, %c0_2] : memref<16x128xbf16, #tpu.memory_space<vmem>>, vector<16x128xbf16>
    %cst = arith.constant dense<0.000000e+00> : vector<8x128xf32>
    %2 = tpu.matmul %0, %1, %cst {dimension_numbers = #tpu.dot_dimension_numbers<[1], [0], [0], [1], [0, 0, 1, 1], [], []>} : vector<8x16xbf16>, vector<16x128xbf16>, vector<8x128xf32> -> vector<8x128xf32>
    %c0_3 = arith.constant 0 : index
    %c0_4 = arith.constant 0 : index
    %3 = vector.load %arg3[%c0_3, %c0_4] : memref<1x128xf32, #tpu.memory_space<vmem>>, vector<1x128xf32>
    %4 = vector.broadcast %3 : vector<1x128xf32> to vector<8x128xf32>
    %5 = arith.addf %2, %4 : vector<8x128xf32>
    %cst_5 = arith.constant 0.000000e+00 : f32
    %6 = vector.broadcast %cst_5 : f32 to vector<8x128xf32>
    %7 = arith.maximumf %5, %6 : vector<8x128xf32>
    %8 = arith.truncf %7 : vector<8x128xf32> to vector<8x128xbf16>
    %c0_6 = arith.constant 0 : index
    %c0_7 = arith.constant 0 : index
    %9 = vector.load %arg4[%c0_6, %c0_7] : memref<128x128xbf16, #tpu.memory_space<vmem>>, vector<128x128xbf16>
    %cst_8 = arith.constant dense<0.000000e+00> : vector<8x128xf32>
    %10 = tpu.matmul %8, %9, %cst_8 {dimension_numbers = #tpu.dot_dimension_numbers<[1], [0], [0], [1], [0, 0, 1, 1], [], []>} : vector<8x128xbf16>, vector<128x128xbf16>, vector<8x128xf32> -> vector<8x128xf32>
    %c0_9 = arith.constant 0 : index
    %c0_10 = arith.constant 0 : index
    %11 = vector.load %arg5[%c0_9, %c0_10] : memref<1x128xf32, #tpu.memory_space<vmem>>, vector<1x128xf32>
    %12 = vector.broadcast %11 : vector<1x128xf32> to vector<8x128xf32>
    %13 = arith.addf %10, %12 : vector<8x128xf32>
    %cst_11 = arith.constant 0.000000e+00 : f32
    %14 = vector.broadcast %cst_11 : f32 to vector<8x128xf32>
    %15 = arith.maximumf %13, %14 : vector<8x128xf32>
    %16 = arith.truncf %15 : vector<8x128xf32> to vector<8x128xbf16>
    %c0_12 = arith.constant 0 : index
    %c0_13 = arith.constant 0 : index
    %17 = vector.load %arg6[%c0_12, %c0_13] : memref<128x8xbf16, #tpu.memory_space<vmem>>, vector<128x8xbf16>
    %cst_14 = arith.constant dense<0.000000e+00> : vector<8x8xf32>
    %18 = tpu.matmul %16, %17, %cst_14 {dimension_numbers = #tpu.dot_dimension_numbers<[1], [0], [0], [1], [0, 0, 1, 1], [], []>} : vector<8x128xbf16>, vector<128x8xbf16>, vector<8x8xf32> -> vector<8x8xf32>
    %c0_15 = arith.constant 0 : index
    %c0_16 = arith.constant 0 : index
    %19 = vector.load %arg7[%c0_15, %c0_16] : memref<1x8xf32, #tpu.memory_space<vmem>>, vector<1x8xf32>
    %20 = vector.broadcast %19 : vector<1x8xf32> to vector<8x8xf32>
    %21 = arith.addf %18, %20 : vector<8x8xf32>
    %c0_17 = arith.constant 0 : index
    %c0_18 = arith.constant 0 : index
    %22 = vector.load %arg10[%c0_17, %c0_18] : memref<8x8xf32, #tpu.memory_space<vmem>>, vector<8x8xf32>
    tpu.vector_store %arg10[%c0_17, %c0_18], %21 {strides = array<i32>} : memref<8x8xf32, #tpu.memory_space<vmem>>, vector<8x8xf32>,
    %c0_19 = arith.constant 0 : index
    %c0_20 = arith.constant 0 : index
    %23 = vector.load %arg8[%c0_19, %c0_20] : memref<128x8xbf16, #tpu.memory_space<vmem>>, vector<128x8xbf16>
    %cst_21 = arith.constant dense<0.000000e+00> : vector<8x8xf32>
    %24 = tpu.matmul %16, %23, %cst_21 {dimension_numbers = #tpu.dot_dimension_numbers<[1], [0], [0], [1], [0, 0, 1, 1], [], []>} : vector<8x128xbf16>, vector<128x8xbf16>, vector<8x8xf32> -> vector<8x8xf32>
    %c0_22 = arith.constant 0 : index
    %c0_23 = arith.constant 0 : index
    %25 = vector.load %arg9[%c0_22, %c0_23] : memref<1x8xf32, #tpu.memory_space<vmem>>, vector<1x8xf32>
    %26 = vector.broadcast %25 : vector<1x8xf32> to vector<8x8xf32>
    %27 = arith.addf %24, %26 : vector<8x8xf32>
    %cst_24 = arith.constant -2.000000e+01 : f32
    %cst_25 = arith.constant 2.000000e+00 : f32
    %28 = vector.broadcast %cst_24 : f32 to vector<8x8xf32>
    %29 = arith.maximumf %28, %27 : vector<8x8xf32>
    %30 = vector.broadcast %cst_25 : f32 to vector<8x8xf32>
    %31 = arith.minimumf %30, %29 : vector<8x8xf32>
    %c0_26 = arith.constant 0 : index
    %c0_27 = arith.constant 0 : index
    %32 = vector.load %arg11[%c0_26, %c0_27] : memref<8x8xf32, #tpu.memory_space<vmem>>, vector<8x8xf32>
    tpu.vector_store %arg11[%c0_26, %c0_27], %31 {strides = array<i32>} : memref<8x8xf32, #tpu.memory_space<vmem>>, vector<8x8xf32>,
    return
  }
  func.func @transform_0(%arg0: i32) -> (i32, i32) {
    %c0_i32 = arith.constant 0 : i32
    %c0_i32_0 = arith.constant 0 : i32
    return %arg0, %c0_i32 : i32, i32
  }
  func.func @transform_1(%arg0: i32) -> (i32, i32) {
    %c0_i32 = arith.constant 0 : i32
    %c0_i32_0 = arith.constant 0 : i32
    %c0_i32_1 = arith.constant 0 : i32
    return %c0_i32, %c0_i32_0 : i32, i32
  }
  func.func @transform_2(%arg0: i32) -> (i32, i32) {
    %c0_i32 = arith.constant 0 : i32
    %c0_i32_0 = arith.constant 0 : i32
    %c0_i32_1 = arith.constant 0 : i32
    return %c0_i32, %c0_i32_0 : i32, i32
  }
  func.func @transform_3(%arg0: i32) -> (i32, i32) {
    %c0_i32 = arith.constant 0 : i32
    %c0_i32_0 = arith.constant 0 : i32
    %c0_i32_1 = arith.constant 0 : i32
    return %c0_i32, %c0_i32_0 : i32, i32
  }
  func.func @transform_4(%arg0: i32) -> (i32, i32) {
    %c0_i32 = arith.constant 0 : i32
    %c0_i32_0 = arith.constant 0 : i32
    %c0_i32_1 = arith.constant 0 : i32
    return %c0_i32, %c0_i32_0 : i32, i32
  }
  func.func @transform_5(%arg0: i32) -> (i32, i32) {
    %c0_i32 = arith.constant 0 : i32
    %c0_i32_0 = arith.constant 0 : i32
    %c0_i32_1 = arith.constant 0 : i32
    return %c0_i32, %c0_i32_0 : i32, i32
  }
  func.func @transform_6(%arg0: i32) -> (i32, i32) {
    %c0_i32 = arith.constant 0 : i32
    %c0_i32_0 = arith.constant 0 : i32
    %c0_i32_1 = arith.constant 0 : i32
    return %c0_i32, %c0_i32_0 : i32, i32
  }
  func.func @transform_7(%arg0: i32) -> (i32, i32) {
    %c0_i32 = arith.constant 0 : i32
    %c0_i32_0 = arith.constant 0 : i32
    %c0_i32_1 = arith.constant 0 : i32
    return %c0_i32, %c0_i32_0 : i32, i32
  }
  func.func @transform_8(%arg0: i32) -> (i32, i32) {
    %c0_i32 = arith.constant 0 : i32
    %c0_i32_0 = arith.constant 0 : i32
    %c0_i32_1 = arith.constant 0 : i32
    return %c0_i32, %c0_i32_0 : i32, i32
  }
  func.func @transform_9(%arg0: i32) -> (i32, i32) {
    %c0_i32 = arith.constant 0 : i32
    %c0_i32_0 = arith.constant 0 : i32
    return %arg0, %c0_i32 : i32, i32
  }
  func.func @transform_10(%arg0: i32) -> (i32, i32) {
    %c0_i32 = arith.constant 0 : i32
    %c0_i32_0 = arith.constant 0 : i32
    return %arg0, %c0_i32 : i32, i32
  }
}

</mosaic_0001>

<llo_original>
// kernel: tpu_custom_call.1
$region0: #{tpu_custom_call.1}
  #allocation0 [shape = 'u32[]', space=smem, size = 0x4, offset = 0x4, fixed_abs, tag = 'smem constant byte address 0x4 - core index']
  #allocation1 [shape = 'u32[72,128]{1,0:T(1,128)}', space=vmem, size = 0x9000, scoped, tag = 'internal scratch']
  %s0 = inlined_call_operand.vmem [shape: bf16[16,16], index: 0, kind: input, shape index: {}]
  %s1 = inlined_call_operand.vmem [shape: bf16[16,128], index: 1, kind: input, shape index: {}]
  %s2 = inlined_call_operand.vmem [shape: f32[1,128], index: 2, kind: input, shape index: {}]
  %s3 = inlined_call_operand.vmem [shape: bf16[128,128], index: 3, kind: input, shape index: {}]
  %s4 = inlined_call_operand.vmem [shape: f32[1,128], index: 4, kind: input, shape index: {}]
  %s5 = inlined_call_operand.vmem [shape: bf16[128,8], index: 5, kind: input, shape index: {}]
  %s6 = inlined_call_operand.vmem [shape: f32[1,8], index: 6, kind: input, shape index: {}]
  %s7 = inlined_call_operand.vmem [shape: bf16[128,8], index: 7, kind: input, shape index: {}]
  %s8 = inlined_call_operand.vmem [shape: f32[1,8], index: 8, kind: input, shape index: {}]
  %s9 = inlined_call_operand.vmem [shape: f32[16,8], index: 9, kind: output, shape index: {0}]
  %s10 = inlined_call_operand.vmem [shape: f32[16,8], index: 10, kind: output, shape index: {1}]
  %11 = xla_tuple %s9, %s10
  %s12 = sld [smem:[#allocation0]]
  $region77: #{tpu_custom_call.1} parent=0
    _
  %s14 = ssub.s32 1, %s12
  %s15 = scalar_select 0, %s14, %s12
  loop: start=0, step=1, limit=4
  $region2: #{tpu_custom_call.1} parent=0 // loop_pre_header
    _
  $region3: #{tpu_custom_call.1} parent=0 // loop_header
    %s17 = sphi 0, %s21
    %p18 = scmp.ge.s32.totalorder %s17, 4
    %s27 = sphi 0, %s29
    %s30 = sphi 0, %s27
    %s31 = sphi 0, %s30
    %s47 = sphi 0, %s31
    %s51 = sphi 0, %s51
    %s53 = sphi 0, %s51
    %s54 = sphi 0, %s53
    %s68 = sphi 0, %s54
    %s72 = sphi 0, %s72
    %s74 = sphi 0, %s72
    %s75 = sphi 0, %s74
    %s89 = sphi 0, %s75
    %s93 = sphi 0, %s93
    %s95 = sphi 0, %s93
    %s96 = sphi 0, %s95
    %s110 = sphi 0, %s96
    %s114 = sphi 0, %s114
    %s116 = sphi 0, %s114
    %s117 = sphi 0, %s116
    %s131 = sphi 0, %s117
    %s135 = sphi 0, %s135
    %s137 = sphi 0, %s135
    %s138 = sphi 0, %s137
    %s152 = sphi 0, %s138
    %s156 = sphi 0, %s156
    %s158 = sphi 0, %s156
    %s159 = sphi 0, %s158
    %s173 = sphi 0, %s159
    %s177 = sphi 0, %s177
    %s179 = sphi 0, %s177
    %s180 = sphi 0, %s179
    %s194 = sphi 0, %s180
    %s198 = sphi 0, %s198
    %s200 = sphi 0, %s198
    %s201 = sphi 0, %s200
    %s215 = sphi 0, %s201
    %s221 = sphi 0, %s223
    %s224 = sphi 0, %s221
    %s225 = sphi 0, %s224
    %s241 = sphi 0, %s225
    %s247 = sphi 0, %s249
    %s250 = sphi 0, %s247
    %s251 = sphi 0, %s250
    %s267 = sphi 0, %s251
  $region4: #{tpu_custom_call.1} parent=0 // loop_header_branch
    %20 = sbr.rel (%p18) target = $region8
  $region5: #{tpu_custom_call.1} parent=0 // loop_body
    %s22 = ssub.s32 %s17, 1
    %s23 = ssub.s32 %s17, 2
    %s24 = sadd.s32 %s17, 1
    %s25 = ssub.s32 %s17, %s24
    %p26 = scmp.eq.s32.totalorder %s25, 0
    %s28 = sadd.s32 %s27, 1
    %s29 = scalar_select %p26, %s27, %s28
    %p32 = pneg %p26
    %p33 = scmp.eq.s32.totalorder %s17, 1
    %p34 = por %p32, %p33
    %p35 = scmp.ne.s32.totalorder %s27, %s30
    %p36 = scmp.eq.s32.totalorder %s17, 0
    %p37 = por %p35, %p36
    %p38 = scmp.ne.s32.totalorder %s27, %s30
    %p39 = scmp.eq.s32.totalorder %s22, 1
    %p40 = por %p38, %p39
    %p41 = scmp.ne.s32.totalorder %s30, %s31
    %p42 = scmp.eq.s32.totalorder %s22, 0
    %p43 = por %p41, %p42
    %p44 = scmp.ne.s32.totalorder %s30, %s31
    %p45 = scmp.eq.s32.totalorder %s23, 1
    %p46 = por %p44, %p45
    %p48 = scmp.ne.s32.totalorder %s31, %s47
    %p49 = scmp.eq.s32.totalorder %s23, 0
    %p50 = por %p48, %p49
    %s52 = sadd.s32 %s51, 1
    %p55 = scmp.eq.s32.totalorder %s17, 1
    %p56 = scmp.ne.s32.totalorder %s51, %s53
    %p57 = scmp.eq.s32.totalorder %s17, 0
    %p58 = por %p56, %p57
    %p59 = scmp.ne.s32.totalorder %s51, %s53
    %p60 = scmp.eq.s32.totalorder %s22, 1
    %p61 = por %p59, %p60
    %p62 = scmp.ne.s32.totalorder %s53, %s54
    %p63 = scmp.eq.s32.totalorder %s22, 0
    %p64 = por %p62, %p63
    %p65 = scmp.ne.s32.totalorder %s53, %s54
    %p66 = scmp.eq.s32.totalorder %s23, 1
    %p67 = por %p65, %p66
    %p69 = scmp.ne.s32.totalorder %s54, %s68
    %p70 = scmp.eq.s32.totalorder %s23, 0
    %p71 = por %p69, %p70
    %s73 = sadd.s32 %s72, 1
    %p76 = scmp.eq.s32.totalorder %s17, 1
    %p77 = scmp.ne.s32.totalorder %s72, %s74
    %p78 = scmp.eq.s32.totalorder %s17, 0
    %p79 = por %p77, %p78
    %p80 = scmp.ne.s32.totalorder %s72, %s74
    %p81 = scmp.eq.s32.totalorder %s22, 1
    %p82 = por %p80, %p81
    %p83 = scmp.ne.s32.totalorder %s74, %s75
    %p84 = scmp.eq.s32.totalorder %s22, 0
    %p85 = por %p83, %p84
    %p86 = scmp.ne.s32.totalorder %s74, %s75
    %p87 = scmp.eq.s32.totalorder %s23, 1
    %p88 = por %p86, %p87
    %p90 = scmp.ne.s32.totalorder %s75, %s89
    %p91 = scmp.eq.s32.totalorder %s23, 0
    %p92 = por %p90, %p91
    %s94 = sadd.s32 %s93, 1
    %p97 = scmp.eq.s32.totalorder %s17, 1
    %p98 = scmp.ne.s32.totalorder %s93, %s95
    %p99 = scmp.eq.s32.totalorder %s17, 0
    %p100 = por %p98, %p99
    %p101 = scmp.ne.s32.totalorder %s93, %s95
    %p102 = scmp.eq.s32.totalorder %s22, 1
    %p103 = por %p101, %p102
    %p104 = scmp.ne.s32.totalorder %s95, %s96
    %p105 = scmp.eq.s32.totalorder %s22, 0
    %p106 = por %p104, %p105
    %p107 = scmp.ne.s32.totalorder %s95, %s96
    %p108 = scmp.eq.s32.totalorder %s23, 1
    %p109 = por %p107, %p108
    %p111 = scmp.ne.s32.totalorder %s96, %s110
    %p112 = scmp.eq.s32.totalorder %s23, 0
    %p113 = por %p111, %p112
    %s115 = sadd.s32 %s114, 1
    %p118 = scmp.eq.s32.totalorder %s17, 1
    %p119 = scmp.ne.s32.totalorder %s114, %s116
    %p120 = scmp.eq.s32.totalorder %s17, 0
    %p121 = por %p119, %p120
    %p122 = scmp.ne.s32.totalorder %s114, %s116
    %p123 = scmp.eq.s32.totalorder %s22, 1
    %p124 = por %p122, %p123
    %p125 = scmp.ne.s32.totalorder %s116, %s117
    %p126 = scmp.eq.s32.totalorder %s22, 0
    %p127 = por %p125, %p126
    %p128 = scmp.ne.s32.totalorder %s116, %s117
    %p129 = scmp.eq.s32.totalorder %s23, 1
    %p130 = por %p128, %p129
    %p132 = scmp.ne.s32.totalorder %s117, %s131
    %p133 = scmp.eq.s32.totalorder %s23, 0
    %p134 = por %p132, %p133
    %s136 = sadd.s32 %s135, 1
    %p139 = scmp.eq.s32.totalorder %s17, 1
    %p140 = scmp.ne.s32.totalorder %s135, %s137
    %p141 = scmp.eq.s32.totalorder %s17, 0
    %p142 = por %p140, %p141
    %p143 = scmp.ne.s32.totalorder %s135, %s137
    %p144 = scmp.eq.s32.totalorder %s22, 1
    %p145 = por %p143, %p144
    %p146 = scmp.ne.s32.totalorder %s137, %s138
    %p147 = scmp.eq.s32.totalorder %s22, 0
    %p148 = por %p146, %p147
    %p149 = scmp.ne.s32.totalorder %s137, %s138
    %p150 = scmp.eq.s32.totalorder %s23, 1
    %p151 = por %p149, %p150
    %p153 = scmp.ne.s32.totalorder %s138, %s152
    %p154 = scmp.eq.s32.totalorder %s23, 0
    %p155 = por %p153, %p154
    %s157 = sadd.s32 %s156, 1
    %p160 = scmp.eq.s32.totalorder %s17, 1
    %p161 = scmp.ne.s32.totalorder %s156, %s158
    %p162 = scmp.eq.s32.totalorder %s17, 0
    %p163 = por %p161, %p162
    %p164 = scmp.ne.s32.totalorder %s156, %s158
    %p165 = scmp.eq.s32.totalorder %s22, 1
    %p166 = por %p164, %p165
    %p167 = scmp.ne.s32.totalorder %s158, %s159
    %p168 = scmp.eq.s32.totalorder %s22, 0
    %p169 = por %p167, %p168
    %p170 = scmp.ne.s32.totalorder %s158, %s159
    %p171 = scmp.eq.s32.totalorder %s23, 1
    %p172 = por %p170, %p171
    %p174 = scmp.ne.s32.totalorder %s159, %s173
    %p175 = scmp.eq.s32.totalorder %s23, 0
    %p176 = por %p174, %p175
    %s178 = sadd.s32 %s177, 1
    %p181 = scmp.eq.s32.totalorder %s17, 1
    %p182 = scmp.ne.s32.totalorder %s177, %s179
    %p183 = scmp.eq.s32.totalorder %s17, 0
    %p184 = por %p182, %p183
    %p185 = scmp.ne.s32.totalorder %s177, %s179
    %p186 = scmp.eq.s32.totalorder %s22, 1
    %p187 = por %p185, %p186
    %p188 = scmp.ne.s32.totalorder %s179, %s180
    %p189 = scmp.eq.s32.totalorder %s22, 0
    %p190 = por %p188, %p189
    %p191 = scmp.ne.s32.totalorder %s179, %s180
    %p192 = scmp.eq.s32.totalorder %s23, 1
    %p193 = por %p191, %p192
    %p195 = scmp.ne.s32.totalorder %s180, %s194
    %p196 = scmp.eq.s32.totalorder %s23, 0
    %p197 = por %p195, %p196
    %s199 = sadd.s32 %s198, 1
    %p202 = scmp.eq.s32.totalorder %s17, 1
    %p203 = scmp.ne.s32.totalorder %s198, %s200
    %p204 = scmp.eq.s32.totalorder %s17, 0
    %p205 = por %p203, %p204
    %p206 = scmp.ne.s32.totalorder %s198, %s200
    %p207 = scmp.eq.s32.totalorder %s22, 1
    %p208 = por %p206, %p207
    %p209 = scmp.ne.s32.totalorder %s200, %s201
    %p210 = scmp.eq.s32.totalorder %s22, 0
    %p211 = por %p209, %p210
    %p212 = scmp.ne.s32.totalorder %s200, %s201
    %p213 = scmp.eq.s32.totalorder %s23, 1
    %p214 = por %p212, %p213
    %p216 = scmp.ne.s32.totalorder %s201, %s215
    %p217 = scmp.eq.s32.totalorder %s23, 0
    %p218 = por %p216, %p217
    %s219 = ssub.s32 %s17, %s24
    %p220 = scmp.eq.s32.totalorder %s219, 0
    %s222 = sadd.s32 %s221, 1
    %s223 = scalar_select %p220, %s221, %s222
    %p226 = pneg %p220
    %p227 = scmp.eq.s32.totalorder %s17, 1
    %p228 = por %p226, %p227
    %p229 = scmp.ne.s32.totalorder %s221, %s224
    %p230 = scmp.eq.s32.totalorder %s17, 0
    %p231 = por %p229, %p230
    %p232 = scmp.ne.s32.totalorder %s221, %s224
    %p233 = scmp.eq.s32.totalorder %s22, 1
    %p234 = por %p232, %p233
    %p235 = scmp.ne.s32.totalorder %s224, %s225
    %p236 = scmp.eq.s32.totalorder %s22, 0
    %p237 = por %p235, %p236
    %p238 = scmp.ne.s32.totalorder %s224, %s225
    %p239 = scmp.eq.s32.totalorder %s23, 1
    %p240 = por %p238, %p239
    %p242 = scmp.ne.s32.totalorder %s225, %s241
    %p243 = scmp.eq.s32.totalorder %s23, 0
    %p244 = por %p242, %p243
    %s245 = ssub.s32 %s17, %s24
    %p246 = scmp.eq.s32.totalorder %s245, 0
    %s248 = sadd.s32 %s247, 1
    %s249 = scalar_select %p246, %s247, %s248
    %p252 = pneg %p246
    %p253 = scmp.eq.s32.totalorder %s17, 1
    %p254 = por %p252, %p253
    %p255 = scmp.ne.s32.totalorder %s247, %s250
    %p256 = scmp.eq.s32.totalorder %s17, 0
    %p257 = por %p255, %p256
    %p258 = scmp.ne.s32.totalorder %s247, %s250
    %p259 = scmp.eq.s32.totalorder %s22, 1
    %p260 = por %p258, %p259
    %p261 = scmp.ne.s32.totalorder %s250, %s251
    %p262 = scmp.eq.s32.totalorder %s22, 0
    %p263 = por %p261, %p262
    %p264 = scmp.ne.s32.totalorder %s250, %s251
    %p265 = scmp.eq.s32.totalorder %s23, 1
    %p266 = por %p264, %p265
    %p268 = scmp.ne.s32.totalorder %s251, %s267
    %p269 = scmp.eq.s32.totalorder %s23, 0
    %p270 = por %p268, %p269
    %p271 = scmp.le.s32.totalorder 1, %s17
    %p272 = scmp.lt.s32.totalorder %s17, 3
    %p273 = pnand %p271, %p272
    %p274 = pneg %p273
    // Predicated region
    $region9: #{tpu_custom_call.1} parent=5 // pred_check
      _
    $region10: #{tpu_custom_call.1} parent=5 // pred_check_branch
      %276 = sbr.rel (%p273) target = $region12
    $region11: #{tpu_custom_call.1} parent=5 // pred_region
      %s277 = ssub.s32 %s17, 1
      // Predicated region
      $region13: #{tpu_custom_call.1} parent=11 // pred_check
        %p278 = pneg %p64
      $region14: #{tpu_custom_call.1} parent=11 // pred_check_branch
        %280 = sbr.rel (%p278) target = $region16
      $region15: #{tpu_custom_call.1} parent=11 // pred_region
        _
      $region16: #{tpu_custom_call.1} parent=11 // pred_fallthru
        _
      // Predicated region
      $region17: #{tpu_custom_call.1} parent=11 // pred_check
        %p281 = pneg %p85
      $region18: #{tpu_custom_call.1} parent=11 // pred_check_branch
        %283 = sbr.rel (%p281) target = $region20
      $region19: #{tpu_custom_call.1} parent=11 // pred_region
        _
      $region20: #{tpu_custom_call.1} parent=11 // pred_fallthru
        _
      // Predicated region
      $region21: #{tpu_custom_call.1} parent=11 // pred_check
        %p284 = pneg %p106
      $region22: #{tpu_custom_call.1} parent=11 // pred_check_branch
        %286 = sbr.rel (%p284) target = $region24
      $region23: #{tpu_custom_call.1} parent=11 // pred_region
        _
      $region24: #{tpu_custom_call.1} parent=11 // pred_fallthru
        _
      // Predicated region
      $region25: #{tpu_custom_call.1} parent=11 // pred_check
        %p287 = pneg %p127
      $region26: #{tpu_custom_call.1} parent=11 // pred_check_branch
        %289 = sbr.rel (%p287) target = $region28
      $region27: #{tpu_custom_call.1} parent=11 // pred_region
        _
      $region28: #{tpu_custom_call.1} parent=11 // pred_fallthru
        _
      // Predicated region
      $region29: #{tpu_custom_call.1} parent=11 // pred_check
        %p290 = pneg %p148
      $region30: #{tpu_custom_call.1} parent=11 // pred_check_branch
        %292 = sbr.rel (%p290) target = $region32
      $region31: #{tpu_custom_call.1} parent=11 // pred_region
        _
      $region32: #{tpu_custom_call.1} parent=11 // pred_fallthru
        _
      // Predicated region
      $region33: #{tpu_custom_call.1} parent=11 // pred_check
        %p293 = pneg %p169
      $region34: #{tpu_custom_call.1} parent=11 // pred_check_branch
        %295 = sbr.rel (%p293) target = $region36
      $region35: #{tpu_custom_call.1} parent=11 // pred_region
        _
      $region36: #{tpu_custom_call.1} parent=11 // pred_fallthru
        _
      // Predicated region
      $region37: #{tpu_custom_call.1} parent=11 // pred_check
        %p296 = pneg %p190
      $region38: #{tpu_custom_call.1} parent=11 // pred_check_branch
        %298 = sbr.rel (%p296) target = $region40
      $region39: #{tpu_custom_call.1} parent=11 // pred_region
        _
      $region40: #{tpu_custom_call.1} parent=11 // pred_fallthru
        _
      // Predicated region
      $region41: #{tpu_custom_call.1} parent=11 // pred_check
        %p299 = pneg %p211
      $region42: #{tpu_custom_call.1} parent=11 // pred_check_branch
        %301 = sbr.rel (%p299) target = $region44
      $region43: #{tpu_custom_call.1} parent=11 // pred_region
        _
      $region44: #{tpu_custom_call.1} parent=11 // pred_fallthru
        _
    $region12: #{tpu_custom_call.1} parent=5 // pred_fallthru
      _
    %p302 = scmp.lt.s32.totalorder %s17, 2
    // Predicated region
    $region45: #{tpu_custom_call.1} parent=5 // pred_check
      %p303 = pneg %p302
    $region46: #{tpu_custom_call.1} parent=5 // pred_check_branch
      %305 = sbr.rel (%p303) target = $region48
    $region47: #{tpu_custom_call.1} parent=5 // pred_region
      // Predicated region
      $region49: #{tpu_custom_call.1} parent=47 // pred_check
        %p306 = pneg %p37
      $region50: #{tpu_custom_call.1} parent=47 // pred_check_branch
        %308 = sbr.rel (%p306) target = $region52
      $region51: #{tpu_custom_call.1} parent=47 // pred_region
        %p309 = scmp.lt.s32.totalorder %s17, 1
        %s310 = scalar_select %p309, %s17, 1
        %s311 = smul.addr %s310, 4
        %s312 = scalar_lea.vmem %s0, %s311
      $region52: #{tpu_custom_call.1} parent=47 // pred_fallthru
        _
    $region48: #{tpu_custom_call.1} parent=5 // pred_fallthru
      _
    %p313 = scmp.le.s32.totalorder 1, %s17
    %p314 = scmp.lt.s32.totalorder %s17, 3
    %p315 = pnand %p313, %p314
    %p316 = pneg %p315
    // Predicated region
    $region53: #{tpu_custom_call.1} parent=5 // pred_check
      _
    $region54: #{tpu_custom_call.1} parent=5 // pred_check_branch
      %318 = sbr.rel (%p315) target = $region56
    $region55: #{tpu_custom_call.1} parent=5 // pred_region
      %s319 = ssub.s32 %s17, 1
      %p320 = scmp.lt.s32.totalorder %s22, 1
      %s321 = scalar_select %p320, %s22, 1
      %s322 = smul.addr %s321, 4
      %s323 = scalar_lea.vmem %s0, %s322
      %p324 = pneg %p43
      %p325 = pneg %p40
      %p326 = pneg %p64
      %p327 = pneg %p61
      %p328 = pneg %p85
      %p329 = pneg %p82
      %p330 = pneg %p106
      %p331 = pneg %p103
      %p332 = pneg %p127
      %p333 = pneg %p124
      %p334 = pneg %p148
      %p335 = pneg %p145
      %p336 = pneg %p169
      %p337 = pneg %p166
      %p338 = pneg %p190
      %p339 = pneg %p187
      %p340 = pneg %p211
      %p341 = pneg %p208
      %p342 = pneg %p237
      %p343 = pneg %p234
      %p344 = scmp.lt.s32.totalorder %s22, 1
      %s345 = scalar_select %p344, %s22, 1
      %s346 = smul.addr %s345, 8
      %s347 = scalar_lea.vmem %s9, %s346
      %p348 = pneg %p263
      %p349 = pneg %p260
      %p350 = scmp.lt.s32.totalorder %s22, 1
      %s351 = scalar_select %p350, %s22, 1
      %s352 = smul.addr %s351, 8
      %s353 = scalar_lea.vmem %s10, %s352
      %p354 = scmp.lt.s32.totalorder %s22, 1
      %s355 = scalar_select %p354, %s22, 1
      %s356 = smul.addr %s355, 4
      %s357 = scalar_lea.vmem %s0, %s356
      %p358 = scmp.lt.s32.totalorder %s22, 1
      %s359 = scalar_select %p358, %s22, 1
      %s360 = smul.addr %s359, 8
      %s361 = scalar_lea.vmem %s9, %s360
      %p362 = scmp.lt.s32.totalorder %s22, 1
      %s363 = scalar_select %p362, %s22, 1
      %s364 = smul.addr %s363, 8
      %s365 = scalar_lea.vmem %s10, %s364
      %v367 = vld [vmem:[%s357] sm:$0xf]
      %v368 = vld [vmem:[%s1] sm:$0xf]
      %v369 = vld [vmem:[%s1 + $0x4] sm:$0xf]
      %v370 = vld [vmem:[%s2] sm:$0x1]
      %v372 = vperm.slane %v370, 0
      %v376 = vunpack.c.l.b16 %v368
      %v377 = vunpack.c.l.b16 %v369
      %v378 = vpack.c.b16 %v377, %v376
      %vm380 = vcmask 130048
      %v382 = vsel %vm380, %v367, 0
      %384 = vmatpush.bf16.msra.mxu0 0
      %385 = vmatpush.bf16.msra.mxu0 0
      %386 = vmatpush.bf16.msra.mxu0 0
      %387 = vmatpush.bf16.msra.mxu0 0
      %388 = vmatpush.bf16.msra.mxu0 0
      %389 = vmatpush.bf16.msra.mxu0 0
      %390 = vmatpush.bf16.msra.mxu0 0
      %391 = vmatpush.bf16.msra.mxu0 %v378
      %392 = vmatmul.bf16.gmra.mxu0 %v382
      %v393 = vpop.f32.mrf.mxu0
      %v394 = vadd.f32 %v372, %v393
      %v395 = vpop.f32.mrf.mxu0
      %396 = vdwg.mxu0
      %v397 = vmax.f32 %v394, 0.0
      %v398 = vpack.c.bf16 %v397, %v397
      %v399 = vld [vmem:[%s3] sm:$0xf]
      %v400 = vld [vmem:[%s3 + $0x4] sm:$0xf]
      %v401 = vld [vmem:[%s3 + $0x8] sm:$0xf]
      %v402 = vld [vmem:[%s3 + $0xc] sm:$0xf]
      %v403 = vld [vmem:[%s3 + $0x10] sm:$0xf]
      %v404 = vld [vmem:[%s3 + $0x14] sm:$0xf]
      %v405 = vld [vmem:[%s3 + $0x18] sm:$0xf]
      %v406 = vld [vmem:[%s3 + $0x1c] sm:$0xf]
      %v407 = vld [vmem:[%s3 + $0x20] sm:$0xf]
      %v408 = vld [vmem:[%s3 + $0x24] sm:$0xf]
      %v409 = vld [vmem:[%s3 + $0x28] sm:$0xf]
      %v410 = vld [vmem:[%s3 + $0x2c] sm:$0xf]
      %v411 = vld [vmem:[%s3 + $0x30] sm:$0xf]
      %v412 = vld [vmem:[%s3 + $0x34] sm:$0xf]
      %v413 = vld [vmem:[%s3 + $0x38] sm:$0xf]
      %v414 = vld [vmem:[%s3 + $0x3c] sm:$0xf]
      %v415 = vld [vmem:[%s4] sm:$0x1]
      %v417 = vperm.slane %v415, 0
      %v435 = vunpack.c.l.b16 %v399
      %v436 = vunpack.c.l.b16 %v400
      %v437 = vunpack.c.l.b16 %v401
      %v438 = vunpack.c.l.b16 %v402
      %v439 = vunpack.c.l.b16 %v403
      %v440 = vunpack.c.l.b16 %v404
      %v441 = vunpack.c.l.b16 %v405
      %v442 = vunpack.c.l.b16 %v406
      %v443 = vunpack.c.l.b16 %v407
      %v444 = vunpack.c.l.b16 %v408
      %v445 = vunpack.c.l.b16 %v409
      %v446 = vunpack.c.l.b16 %v410
      %v447 = vunpack.c.l.b16 %v411
      %v448 = vunpack.c.l.b16 %v412
      %v449 = vunpack.c.l.b16 %v413
      %v450 = vunpack.c.l.b16 %v414
      %v451 = vpack.c.b16 %v436, %v435
      %v452 = vpack.c.b16 %v438, %v437
      %v453 = vpack.c.b16 %v440, %v439
      %v454 = vpack.c.b16 %v442, %v441
      %v455 = vpack.c.b16 %v444, %v443
      %v456 = vpack.c.b16 %v446, %v445
      %v457 = vpack.c.b16 %v448, %v447
      %v458 = vpack.c.b16 %v450, %v449
      %467 = vmatpush.bf16.msra.mxu0 %v458
      %468 = vmatpush.bf16.msra.mxu0 %v457
      %469 = vmatpush.bf16.msra.mxu0 %v456
      %470 = vmatpush.bf16.msra.mxu0 %v455
      %471 = vmatpush.bf16.msra.mxu0 %v454
      %472 = vmatpush.bf16.msra.mxu0 %v453
      %473 = vmatpush.bf16.msra.mxu0 %v452
      %474 = vmatpush.bf16.msra.mxu0 %v451
      %475 = vmatmul.bf16.gmra.mxu0 %v398
      %v476 = vpop.f32.mrf.mxu0
      %v477 = vadd.f32 %v417, %v476
      %v478 = vpop.f32.mrf.mxu0
      %479 = vdwg.mxu0
      %v480 = vmax.f32 %v477, 0.0
      %v481 = vpack.c.bf16 %v480, %v480
      %v482 = vld [vmem:[%s5] sm:$0xf]
      %v483 = vld [vmem:[%s5 + $0x4] sm:$0xf]
      %v484 = vld [vmem:[%s5 + $0x8] sm:$0xf]
      %v485 = vld [vmem:[%s5 + $0xc] sm:$0xf]
      %v486 = vld [vmem:[%s5 + $0x10] sm:$0xf]
      %v487 = vld [vmem:[%s5 + $0x14] sm:$0xf]
      %v488 = vld [vmem:[%s5 + $0x18] sm:$0xf]
      %v489 = vld [vmem:[%s5 + $0x1c] sm:$0xf]
      %v490 = vld [vmem:[%s5 + $0x20] sm:$0xf]
      %v491 = vld [vmem:[%s5 + $0x24] sm:$0xf]
      %v492 = vld [vmem:[%s5 + $0x28] sm:$0xf]
      %v493 = vld [vmem:[%s5 + $0x2c] sm:$0xf]
      %v494 = vld [vmem:[%s5 + $0x30] sm:$0xf]
      %v495 = vld [vmem:[%s5 + $0x34] sm:$0xf]
      %v496 = vld [vmem:[%s5 + $0x38] sm:$0xf]
      %v497 = vld [vmem:[%s5 + $0x3c] sm:$0xf]
      %v498 = vld [vmem:[%s6] sm:$0x1]
      %v500 = vperm.slane %v498, 0
      %v518 = vunpack.c.l.b16 %v482
      %v519 = vunpack.c.l.b16 %v483
      %v520 = vunpack.c.l.b16 %v484
      %v521 = vunpack.c.l.b16 %v485
      %v522 = vunpack.c.l.b16 %v486
      %v523 = vunpack.c.l.b16 %v487
      %v524 = vunpack.c.l.b16 %v488
      %v525 = vunpack.c.l.b16 %v489
      %v526 = vunpack.c.l.b16 %v490
      %v527 = vunpack.c.l.b16 %v491
      %v528 = vunpack.c.l.b16 %v492
      %v529 = vunpack.c.l.b16 %v493
      %v530 = vunpack.c.l.b16 %v494
      %v531 = vunpack.c.l.b16 %v495
      %v532 = vunpack.c.l.b16 %v496
      %v533 = vunpack.c.l.b16 %v497
      %v534 = vpack.c.b16 %v519, %v518
      %v535 = vpack.c.b16 %v521, %v520
      %v536 = vpack.c.b16 %v523, %v522
      %v537 = vpack.c.b16 %v525, %v524
      %v538 = vpack.c.b16 %v527, %v526
      %v539 = vpack.c.b16 %v529, %v528
      %v540 = vpack.c.b16 %v531, %v530
      %v541 = vpack.c.b16 %v533, %v532
      %550 = vmatpush.bf16.msra.mxu0 %v541
      %551 = vmatpush.bf16.msra.mxu0 %v540
      %552 = vmatpush.bf16.msra.mxu0 %v539
      %553 = vmatpush.bf16.msra.mxu0 %v538
      %554 = vmatpush.bf16.msra.mxu0 %v537
      %555 = vmatpush.bf16.msra.mxu0 %v536
      %556 = vmatpush.bf16.msra.mxu0 %v535
      %557 = vmatpush.bf16.msra.mxu0 %v534
      %558 = vmatmul.bf16.gmra.mxu0 %v481
      %v559 = vpop.f32.mrf.mxu0
      %v560 = vadd.f32 %v500, %v559
      %v561 = vpop.f32.mrf.mxu0
      %562 = vdwg.mxu0
      %vm563 = vcmask 64512
      %564 = vst.msk [vmem:[%s361] sm:$0xff] %vm563, %v560
      %v565 = vld [vmem:[%s7] sm:$0xf]
      %v566 = vld [vmem:[%s7 + $0x4] sm:$0xf]
      %v567 = vld [vmem:[%s7 + $0x8] sm:$0xf]
      %v568 = vld [vmem:[%s7 + $0xc] sm:$0xf]
      %v569 = vld [vmem:[%s7 + $0x10] sm:$0xf]
      %v570 = vld [vmem:[%s7 + $0x14] sm:$0xf]
      %v571 = vld [vmem:[%s7 + $0x18] sm:$0xf]
      %v572 = vld [vmem:[%s7 + $0x1c] sm:$0xf]
      %v573 = vld [vmem:[%s7 + $0x20] sm:$0xf]
      %v574 = vld [vmem:[%s7 + $0x24] sm:$0xf]
      %v575 = vld [vmem:[%s7 + $0x28] sm:$0xf]
      %v576 = vld [vmem:[%s7 + $0x2c] sm:$0xf]
      %v577 = vld [vmem:[%s7 + $0x30] sm:$0xf]
      %v578 = vld [vmem:[%s7 + $0x34] sm:$0xf]
      %v579 = vld [vmem:[%s7 + $0x38] sm:$0xf]
      %v580 = vld [vmem:[%s7 + $0x3c] sm:$0xf]
      %v581 = vld [vmem:[%s8] sm:$0x1]
      %v583 = vperm.slane %v581, 0
      %v601 = vunpack.c.l.b16 %v565
      %v602 = vunpack.c.l.b16 %v566
      %v603 = vunpack.c.l.b16 %v567
      %v604 = vunpack.c.l.b16 %v568
      %v605 = vunpack.c.l.b16 %v569
      %v606 = vunpack.c.l.b16 %v570
      %v607 = vunpack.c.l.b16 %v571
      %v608 = vunpack.c.l.b16 %v572
      %v609 = vunpack.c.l.b16 %v573
      %v610 = vunpack.c.l.b16 %v574
      %v611 = vunpack.c.l.b16 %v575
      %v612 = vunpack.c.l.b16 %v576
      %v613 = vunpack.c.l.b16 %v577
      %v614 = vunpack.c.l.b16 %v578
      %v615 = vunpack.c.l.b16 %v579
      %v616 = vunpack.c.l.b16 %v580
      %v617 = vpack.c.b16 %v602, %v601
      %v618 = vpack.c.b16 %v604, %v603
      %v619 = vpack.c.b16 %v606, %v605
      %v620 = vpack.c.b16 %v608, %v607
      %v621 = vpack.c.b16 %v610, %v609
      %v622 = vpack.c.b16 %v612, %v611
      %v623 = vpack.c.b16 %v614, %v613
      %v624 = vpack.c.b16 %v616, %v615
      %633 = vmatpush.bf16.msra.mxu0 %v624
      %634 = vmatpush.bf16.msra.mxu0 %v623
      %635 = vmatpush.bf16.msra.mxu0 %v622
      %636 = vmatpush.bf16.msra.mxu0 %v621
      %637 = vmatpush.bf16.msra.mxu0 %v620
      %638 = vmatpush.bf16.msra.mxu0 %v619
      %639 = vmatpush.bf16.msra.mxu0 %v618
      %640 = vmatpush.bf16.msra.mxu0 %v617
      %641 = vmatmul.bf16.gmra.mxu0 %v481
      %v642 = vpop.f32.mrf.mxu0
      %v643 = vadd.f32 %v583, %v642
      %v644 = vpop.f32.mrf.mxu0
      %645 = vdwg.mxu0
      %v646 = vmax.f32 %v643, -20.0
      %v647 = vmin.f32 %v646, 2.0
      %648 = vst.msk [vmem:[%s365] sm:$0xff] %vm563, %v647
      %p649 = scmp.lt.s32.totalorder %s22, 1
      %s650 = scalar_select %p649, %s22, 1
      %s651 = smul.addr %s650, 8
      %s652 = scalar_lea.vmem %s9, %s651
      %p653 = scmp.lt.s32.totalorder %s22, 1
      %s654 = scalar_select %p653, %s22, 1
      %s655 = smul.addr %s654, 8
      %s656 = scalar_lea.vmem %s10, %s655
      // Predicated region
      $region57: #{tpu_custom_call.1} parent=55 // pred_check
        %p657 = pneg %p234
      $region58: #{tpu_custom_call.1} parent=55 // pred_check_branch
        %659 = sbr.rel (%p657) target = $region60
      $region59: #{tpu_custom_call.1} parent=55 // pred_region
        _
      $region60: #{tpu_custom_call.1} parent=55 // pred_fallthru
        _
      // Predicated region
      $region61: #{tpu_custom_call.1} parent=55 // pred_check
        %p660 = pneg %p260
      $region62: #{tpu_custom_call.1} parent=55 // pred_check_branch
        %662 = sbr.rel (%p660) target = $region64
      $region63: #{tpu_custom_call.1} parent=55 // pred_region
        _
      $region64: #{tpu_custom_call.1} parent=55 // pred_fallthru
        _
    $region56: #{tpu_custom_call.1} parent=5 // pred_fallthru
      _
    %p663 = scmp.le.s32.totalorder 2, %s17
    // Predicated region
    $region65: #{tpu_custom_call.1} parent=5 // pred_check
      %p664 = pneg %p663
    $region66: #{tpu_custom_call.1} parent=5 // pred_check_branch
      %666 = sbr.rel (%p664) target = $region68
    $region67: #{tpu_custom_call.1} parent=5 // pred_region
      %s667 = ssub.s32 %s17, 2
      // Predicated region
      $region69: #{tpu_custom_call.1} parent=67 // pred_check
        %p668 = pneg %p240
      $region70: #{tpu_custom_call.1} parent=67 // pred_check_branch
        %670 = sbr.rel (%p668) target = $region72
      $region71: #{tpu_custom_call.1} parent=67 // pred_region
        %p671 = scmp.lt.s32.totalorder %s23, 1
        %s672 = scalar_select %p671, %s23, 1
        %s673 = smul.addr %s672, 8
        %s674 = scalar_lea.vmem %s9, %s673
      $region72: #{tpu_custom_call.1} parent=67 // pred_fallthru
        _
      // Predicated region
      $region73: #{tpu_custom_call.1} parent=67 // pred_check
        %p675 = pneg %p266
      $region74: #{tpu_custom_call.1} parent=67 // pred_check_branch
        %677 = sbr.rel (%p675) target = $region76
      $region75: #{tpu_custom_call.1} parent=67 // pred_region
        %p678 = scmp.lt.s32.totalorder %s23, 1
        %s679 = scalar_select %p678, %s23, 1
        %s680 = smul.addr %s679, 8
        %s681 = scalar_lea.vmem %s10, %s680
      $region76: #{tpu_custom_call.1} parent=67 // pred_fallthru
        _
    $region68: #{tpu_custom_call.1} parent=5 // pred_fallthru
      _
  $region6: #{tpu_custom_call.1} parent=0 // loop_footer
    %s21 = sadd.s32 1, %s17
  $region7: #{tpu_custom_call.1} parent=0 // loop_footer_branch
    %16 = sbr.rel target = $region3
  $region8: #{tpu_custom_call.1} parent=0 // loop_exit
    _

</llo_original>
